<compile_context>
chip_gen: v7x
topology: tpu7x:2x2x1
jax: 0.10.0
libtpu: 0.0.40
codegen_flags: <defaults>
</compile_context>

<pallas_src>
import functools

import numpy as np
import jax
import jax.numpy as jnp
from jax import lax
from jax.experimental import pallas as pl
from jax.experimental.pallas import tpu as pltpu

# 3x3 tap offsets, tap-major order (dy outer, dx inner) — must match the
# weight-slab column order built in prepare_kernel_params.
_OFFSETS = tuple((dy, dx) for dy in (-1, 0, 1) for dx in (-1, 0, 1))


def _pad8(c):
    return ((c + 7) // 8) * 8


# ----------------------------- Pallas kernel --------------------------------
def up_block_kernel(down_ref, skip_ref, uwt_ref, mask_ref, w1_ref, b1_ref,
                    w2_ref, b2_ref, o_ref, *, height, width, c_up, h_pairs):
    # down_ref: (1, Hin*Cup, Win)  bf16  low-res input, rows ordered (ih, c)
    # skip_ref: (1, Cskip, H*W)    f32   skip input, flattened NCHW
    # uwt_ref : (Win, Wout)        bf16  U_w^T: bilinear x2 W-interp weights
    # mask_ref: (9, H*W)           f32   0/1 validity of each 3x3 tap (pad=1)
    # w1_ref  : (Cmid_p, 9*Cin)    bf16  conv1 weights, BN1 scale folded in
    # b1_ref  : (Cmid_p, 1)        f32   folded conv1 bias + BN1
    # w2_ref  : (Cout_p, 9*Cmid_p) bf16  conv2 weights, BN2 scale folded in
    # b2_ref  : (Cout_p, 1)        f32
    # o_ref   : (1, Cout_p, H*W)   f32   lane-dense output (H*W multiple of 128)
    H, W = height, width
    HW = H * W

    # ---- bilinear x2 upsample (align_corners=True), separable form ----
    # W axis: one tiny lane-axis MXU matmul (Win -> Wout).
    t = jnp.dot(down_ref[0], uwt_ref[...],
                preferred_element_type=jnp.float32)          # (Hin*Cup, Wout) f32
    # H axis: 2-tap f32 lerp per output row (static unroll, host-precomputed
    # (i0, i1, frac) pairs), assembled directly into the flat lane-dense layout.
    rows = []
    for (i0, i1, f) in h_pairs:
        r0 = t[i0 * c_up:(i0 + 1) * c_up, :]                 # (Cup, Wout)
        if i1 == i0 or f == 0.0:
            rows.append(r0)
        else:
            r1 = t[i1 * c_up:(i1 + 1) * c_up, :]
            rows.append(r0 * (1.0 - f) + r1 * f)
    up = jnp.concatenate(rows, axis=1)                       # (Cup, H*W) f32

    # ---- channel concat fused in-register (torch.cat([up, skip], dim=1)) ----
    x1 = jnp.concatenate([up, skip_ref[0]], axis=0)          # (Cin, H*W) f32

    masks = mask_ref[...]                                    # (9, H*W) f32

    def im2col(a):
        # a: (C, HW) f32 -> (9*C, HW) f32; taps via XLU lane rolls, padding=1
        # handled by multiplying with the precomputed 0/1 validity rows.
        taps = []
        for tap, (dy, dx) in enumerate(_OFFSETS):
            s = dy * W + dx
            shifted = a if s == 0 else pltpu.roll(a, shift=(-s) % HW, axis=1)
            taps.append(shifted * masks[tap:tap + 1, :])
        return jnp.concatenate(taps, axis=0)

    # ---- conv1 (3x3, pad=1) + folded BN1 + ReLU: single im2col matmul ----
    h1 = jnp.dot(w1_ref[...], im2col(x1).astype(jnp.bfloat16),
                 preferred_element_type=jnp.float32) + b1_ref[...]
    h1 = jnp.maximum(h1, 0.0)                                # (Cmid_p, H*W)

    # ---- conv2 (3x3, pad=1) + folded BN2 + ReLU ----
    h2 = jnp.dot(w2_ref[...], im2col(h1).astype(jnp.bfloat16),
                 preferred_element_type=jnp.float32) + b2_ref[...]
    h2 = jnp.maximum(h2, 0.0)                                # (Cout_p, H*W)

    o_ref[0] = h2.astype(o_ref.dtype)


def _const_spec(shape):
    """BlockSpec for a grid-invariant input; single-buffered where supported."""
    index_map = lambda i: tuple(0 for _ in shape)
    try:
        return pl.BlockSpec(shape, index_map, pipeline_mode=pl.Buffered(1))
    except TypeError:   # pipeline_mode not available: fall back to default
        return pl.BlockSpec(shape, index_map)


def up_block_forward(down_nchw, skip_nchw, kp):
    """UpBlock forward. down: (N,Cup,H/2,W/2), skip: (N,Cskip,H,W) -> (N,Cout,H,W)."""
    n, c_up, h_in, w_in = down_nchw.shape
    n2, c_skip, h, w = skip_nchw.shape
    assert n == n2 and h == 2 * h_in and w == 2 * w_in
    c_out = kp["c_out"]
    c_out_p = kp["w2"].shape[0]
    hw = h * w

    # Low-res input: (N,Cup,Hin,Win) -> rows ordered (ih, c) so the in-kernel
    # H-interp uses contiguous sublane slices.  bf16: it is a pure MXU operand.
    down_r = jnp.transpose(down_nchw, (0, 2, 1, 3)).reshape(n, h_in * c_up, w_in)
    down_r = down_r.astype(jnp.bfloat16)
    # Skip path: contiguous NCHW reshape (no transpose); stays f32 (VPU path).
    skip_flat = skip_nchw.reshape(n, c_skip, hw)

    h_pairs = _interp_pairs(h_in, h)

    out_flat = pl.pallas_call(
        functools.partial(up_block_kernel, height=h, width=w, c_up=c_up,
                          h_pairs=h_pairs),
        out_shape=jax.ShapeDtypeStruct((n, c_out_p, hw), jnp.float32),
        grid=(n,),
        in_specs=[
            pl.BlockSpec((1, h_in * c_up, w_in), lambda i: (i, 0, 0)),
            pl.BlockSpec((1, c_skip, hw), lambda i: (i, 0, 0)),
            _const_spec(kp["u_wt"].shape),
            _const_spec(kp["masks"].shape),
            _const_spec(kp["w1"].shape),
            _const_spec(kp["b1"].shape),
            _const_spec(kp["w2"].shape),
            _const_spec(kp["b2"].shape),
        ],
        # lane-dense output block: last dim H*W is a multiple of 128, channel
        # dim padded to 8 so stores fill whole (8,128) tiles.
        out_specs=pl.BlockSpec((1, c_out_p, hw), lambda i: (i, 0, 0)),
        compiler_params=pltpu.CompilerParams(
            dimension_semantics=("parallel",),
            vmem_limit_bytes=32 * 1024 * 1024),
    )(down_r, skip_flat, kp["u_wt"], kp["masks"], kp["w1"], kp["b1"],
      kp["w2"], kp["b2"])
    # Drop the zero-padded output channels, restore NCHW.
    return out_flat[:, :c_out, :].reshape(n, c_out, h, w)


# --------------------------- parameter preparation ---------------------------
def _upsample_matrix(n_in, n_out):
    """(n_out, n_in) bilinear interpolation matrix, align_corners=True."""
    m = np.zeros((n_out, n_in), np.float32)
    if n_in == 1:
        m[:, 0] = 1.0
        return m
    for o in range(n_out):
        src = o * (n_in - 1) / (n_out - 1)
        i0 = min(max(int(np.floor(src)), 0), n_in - 1)
        i1 = min(i0 + 1, n_in - 1)
        f = src - i0
        m[o, i0] += 1.0 - f
        m[o, i1] += f
    return m


def _interp_pairs(n_in, n_out):
    """Static per-output-row (i0, i1, frac) pairs, align_corners=True."""
    if n_in == 1:
        return tuple((0, 0, 0.0) for _ in range(n_out))
    pairs = []
    for o in range(n_out):
        src = o * (n_in - 1) / (n_out - 1)
        i0 = min(max(int(np.floor(src)), 0), n_in - 1)
        i1 = min(i0 + 1, n_in - 1)
        pairs.append((i0, i1, float(src - i0)))
    return tuple(pairs)


def _tap_masks(h, w):
    """(9, h*w) 0/1 validity of each 3x3 tap under padding=1 (host constant)."""
    ys, xs = np.meshgrid(np.arange(h), np.arange(w), indexing="ij")
    ys, xs = ys.reshape(-1), xs.reshape(-1)
    rows = []
    for dy, dx in _OFFSETS:
        valid = ((ys + dy >= 0) & (ys + dy < h) & (xs + dx >= 0) & (xs + dx < w))
        rows.append(valid.astype(np.float32))
    return jnp.asarray(np.stack(rows, axis=0))


def init_raw_params(key, in_channels, out_channels):
    """Deterministic synthetic PyTorch-style parameters for DoubleConv."""
    ks = jax.random.split(key, 8)
    cmid = out_channels
    w1 = 0.1 * jax.random.normal(ks[0], (cmid, in_channels, 3, 3), jnp.float32)
    cb1 = 0.05 * jax.random.normal(ks[1], (cmid,), jnp.float32)
    g1 = 1.0 + 0.1 * jax.random.normal(ks[2], (cmid,), jnp.float32)
    be1 = 0.05 * jax.random.normal(ks[3], (cmid,), jnp.float32)
    w2 = 0.1 * jax.random.normal(ks[4], (out_channels, cmid, 3, 3), jnp.float32)
    cb2 = 0.05 * jax.random.normal(ks[5], (out_channels,), jnp.float32)
    g2 = 1.0 + 0.1 * jax.random.normal(ks[6], (out_channels,), jnp.float32)
    be2 = 0.05 * jax.random.normal(ks[7], (out_channels,), jnp.float32)
    return dict(
        w1=w1, cb1=cb1, g1=g1, be1=be1,
        rm1=jnp.zeros((cmid,), jnp.float32), rv1=jnp.ones((cmid,), jnp.float32),
        w2=w2, cb2=cb2, g2=g2, be2=be2,
        rm2=jnp.zeros((out_channels,), jnp.float32),
        rv2=jnp.ones((out_channels,), jnp.float32),
    )


def prepare_kernel_params(raw, h_in, w_in, eps=1e-5):
    """Fold BN into conv weights/bias, pad channels to the sublane multiple,
    pre-cast MXU operands to bf16, precompute interp weights and tap masks."""
    def fold(w_oihw, cb, g, be, rm, rv, cin_pad, cout_pad):
        cout, cin, kh, kw = w_oihw.shape
        scale = g / jnp.sqrt(rv + eps)                       # (Cout,)
        bias = (cb - rm) * scale + be                        # (Cout,)
        w = w_oihw * scale[:, None, None, None]              # fold BN scale in
        w = jnp.pad(w, ((0, cout_pad - cout), (0, cin_pad - cin),
                        (0, 0), (0, 0)))
        # (Cout_p, kh, kw, Cin_p) -> (Cout_p, 9*Cin_p): tap-major, channel-minor
        w_mat = jnp.transpose(w, (0, 2, 3, 1)).reshape(cout_pad,
                                                       kh * kw * cin_pad)
        b = jnp.pad(bias, (0, cout_pad - cout))[:, None]     # (Cout_p, 1)
        return w_mat.astype(jnp.bfloat16), b.astype(jnp.float32)

    cmid, cin1 = raw["w1"].shape[0], raw["w1"].shape[1]
    cout = raw["w2"].shape[0]
    cmid_p, cout_p = _pad8(cmid), _pad8(cout)

    # conv1 input is [up, skip] with exactly cin1 real rows; conv2 input is h1
    # with cmid_p rows (padded channels are exactly zero -> zero weights).
    w1m, b1 = fold(raw["w1"], raw["cb1"], raw["g1"], raw["be1"],
                   raw["rm1"], raw["rv1"], cin1, cmid_p)
    w2m, b2 = fold(raw["w2"], raw["cb2"], raw["g2"], raw["be2"],
                   raw["rm2"], raw["rv2"], cmid_p, cout_p)

    u_wt = jnp.asarray(_upsample_matrix(w_in, 2 * w_in).T).astype(jnp.bfloat16)
    masks = _tap_masks(2 * h_in, 2 * w_in)
    return dict(u_wt=u_wt, masks=masks, w1=w1m, b1=b1, w2=w2m, b2=b2,
                c_out=cout)


# --------------------------- plain-JAX reference ------------------------------
def _bilinear_up_x2_ref(x):
    """x: (N,C,H,W) -> (N,C,2H,2W), PyTorch bilinear align_corners=True."""
    N, C, H, W = x.shape

    def coords(n_in, n_out):
        if n_in == 1:
            z = jnp.zeros((n_out,), jnp.int32)
            return z, z, jnp.zeros((n_out,), jnp.float32)
        src = jnp.arange(n_out, dtype=jnp.float32) * ((n_in - 1) / (n_out - 1))
        i0 = jnp.clip(jnp.floor(src).astype(jnp.int32), 0, n_in - 1)
        i1 = jnp.minimum(i0 + 1, n_in - 1)
        return i0, i1, src - i0.astype(jnp.float32)

    y0, y1, wy = coords(H, 2 * H)
    x0, x1, wx = coords(W, 2 * W)
    rows = (x[:, :, y0, :] * (1.0 - wy)[None, None, :, None]
            + x[:, :, y1, :] * wy[None, None, :, None])
    out = (rows[:, :, :, x0] * (1.0 - wx)[None, None, None, :]
           + rows[:, :, :, x1] * wx[None, None, None, :])
    return out


def _reference(down_nchw, skip_nchw, raw, eps=1e-5):
    x = _bilinear_up_x2_ref(down_nchw)
    x = jnp.concatenate([x, skip_nchw], axis=1)

    def conv_bn_relu(x, w_oihw, cb, g, be, rm, rv):
        y = lax.conv_general_dilated(
            x, w_oihw, window_strides=(1, 1), padding=((1, 1), (1, 1)),
            dimension_numbers=('NCHW', 'OIHW', 'NCHW'))
        y = y + cb[None, :, None, None]
        y = ((y - rm[None, :, None, None]) / jnp.sqrt(rv + eps)[None, :, None, None]
             * g[None, :, None, None] + be[None, :, None, None])
        return jnp.maximum(y, 0.0)

    x = conv_bn_relu(x, raw["w1"], raw["cb1"], raw["g1"], raw["be1"],
                     raw["rm1"], raw["rv1"])
    x = conv_bn_relu(x, raw["w2"], raw["cb2"], raw["g2"], raw["be2"],
                     raw["rm2"], raw["rv2"])
    return x


# ------------------------------------ main ------------------------------------
if __name__ == "__main__":
    # UpBlock(in_channels=8, out_channels=4, up_sample_mode='bilinear')
    in_channels = 8
    out_channels = 4
    N, H, W = 2, 16, 16                        # skip-path spatial size
    down_c = in_channels - out_channels        # channels of the low-res input
    Hin, Win = H // 2, W // 2

    key = jax.random.PRNGKey(0)
    k_down, k_skip, k_params = jax.random.split(key, 3)
    down_input = jax.random.normal(k_down, (N, down_c, Hin, Win), jnp.float32)
    skip_input = jax.random.normal(k_skip, (N, out_channels, H, W), jnp.float32)

    raw = init_raw_params(k_params, in_channels, out_channels)
    kparams = prepare_kernel_params(raw, Hin, Win)

    out = jax.block_until_ready(up_block_forward(down_input, skip_input, kparams))
    ref = jax.block_until_ready(_reference(down_input, skip_input, raw))

    assert out.shape == (N, out_channels, H, W), out.shape
    # bf16 MXU operands with f32 accumulation: tolerance loosened per review.
    np.testing.assert_allclose(np.asarray(out), np.asarray(ref),
                               rtol=2e-2, atol=3e-2)
    print("KERNEL_OK")
</pallas_src>

<mosaic_0001>
module attributes {stable_mosaic.version = 11 : i64} {
  func.func @up_block_kernel(%arg0: i32, %arg1: memref<1x32x8xbf16, #tpu.memory_space<vmem>>, %arg2: memref<1x4x256xf32, #tpu.memory_space<vmem>>, %arg3: memref<8x16xbf16, #tpu.memory_space<vmem>>, %arg4: memref<9x256xf32, #tpu.memory_space<vmem>>, %arg5: memref<8x72xbf16, #tpu.memory_space<vmem>>, %arg6: memref<8x1xf32, #tpu.memory_space<vmem>>, %arg7: memref<8x72xbf16, #tpu.memory_space<vmem>>, %arg8: memref<8x1xf32, #tpu.memory_space<vmem>>, %arg9: memref<1x8x256xf32, #tpu.memory_space<vmem>>) attributes {dimension_semantics = [#tpu.dimension_semantics<parallel>], iteration_bounds = array<i64: 2>, scalar_prefetch = 0 : i64, scratch_operands = 0 : i64, tpu.core_type = #tpu.core_type<tc>, window_params = [{transform_indices = @transform_0, window_bounds = array<i64: 1, 32, 8>}, {transform_indices = @transform_1, window_bounds = array<i64: 1, 4, 256>}, {pipeline_mode = #tpu.pipeline_mode<synchronous>, transform_indices = @transform_2, window_bounds = array<i64: 8, 16>}, {pipeline_mode = #tpu.pipeline_mode<synchronous>, transform_indices = @transform_3, window_bounds = array<i64: 9, 256>}, {pipeline_mode = #tpu.pipeline_mode<synchronous>, transform_indices = @transform_4, window_bounds = array<i64: 8, 72>}, {pipeline_mode = #tpu.pipeline_mode<synchronous>, transform_indices = @transform_5, window_bounds = array<i64: 8, 1>}, {pipeline_mode = #tpu.pipeline_mode<synchronous>, transform_indices = @transform_6, window_bounds = array<i64: 8, 72>}, {pipeline_mode = #tpu.pipeline_mode<synchronous>, transform_indices = @transform_7, window_bounds = array<i64: 8, 1>}, {transform_indices = @transform_8, window_bounds = array<i64: 1, 8, 256>}]} {
    %c0 = arith.constant 0 : index
    %c0_0 = arith.constant 0 : index
    %c0_1 = arith.constant 0 : index
    %0 = vector.load %arg1[%c0, %c0_0, %c0_1] : memref<1x32x8xbf16, #tpu.memory_space<vmem>>, vector<1x32x8xbf16>
    %1 = vector.shape_cast %0 : vector<1x32x8xbf16> to vector<32x8xbf16>
    %c0_2 = arith.constant 0 : index
    %c0_3 = arith.constant 0 : index
    %2 = vector.load %arg3[%c0_2, %c0_3] : memref<8x16xbf16, #tpu.memory_space<vmem>>, vector<8x16xbf16>
    %cst = arith.constant dense<0.000000e+00> : vector<32x16xf32>
    %3 = tpu.matmul %1, %2, %cst {dimension_numbers = #tpu.dot_dimension_numbers<[1], [0], [0], [1], [0, 0, 1, 1], [], []>} : vector<32x8xbf16>, vector<8x16xbf16>, vector<32x16xf32> -> vector<32x16xf32>
    %4 = vector.extract_strided_slice %3 {offsets = [0, 0], sizes = [4, 16], strides = [1, 1]} : vector<32x16xf32> to vector<4x16xf32>
    %5 = vector.extract_strided_slice %3 {offsets = [0, 0], sizes = [4, 16], strides = [1, 1]} : vector<32x16xf32> to vector<4x16xf32>
    %6 = vector.extract_strided_slice %3 {offsets = [4, 0], sizes = [4, 16], strides = [1, 1]} : vector<32x16xf32> to vector<4x16xf32>
    %cst_4 = arith.constant 0.533333361 : f32
    %7 = vector.broadcast %cst_4 : f32 to vector<4x16xf32>
    %8 = arith.mulf %5, %7 : vector<4x16xf32>
    %cst_5 = arith.constant 0.466666669 : f32
    %9 = vector.broadcast %cst_5 : f32 to vector<4x16xf32>
    %10 = arith.mulf %6, %9 : vector<4x16xf32>
    %11 = arith.addf %8, %10 : vector<4x16xf32>
    %12 = vector.extract_strided_slice %3 {offsets = [0, 0], sizes = [4, 16], strides = [1, 1]} : vector<32x16xf32> to vector<4x16xf32>
    %13 = vector.extract_strided_slice %3 {offsets = [4, 0], sizes = [4, 16], strides = [1, 1]} : vector<32x16xf32> to vector<4x16xf32>
    %cst_6 = arith.constant 0.0666666701 : f32
    %14 = vector.broadcast %cst_6 : f32 to vector<4x16xf32>
    %15 = arith.mulf %12, %14 : vector<4x16xf32>
    %cst_7 = arith.constant 0.933333337 : f32
    %16 = vector.broadcast %cst_7 : f32 to vector<4x16xf32>
    %17 = arith.mulf %13, %16 : vector<4x16xf32>
    %18 = arith.addf %15, %17 : vector<4x16xf32>
    %19 = vector.extract_strided_slice %3 {offsets = [4, 0], sizes = [4, 16], strides = [1, 1]} : vector<32x16xf32> to vector<4x16xf32>
    %20 = vector.extract_strided_slice %3 {offsets = [8, 0], sizes = [4, 16], strides = [1, 1]} : vector<32x16xf32> to vector<4x16xf32>
    %cst_8 = arith.constant 6.000000e-01 : f32
    %21 = vector.broadcast %cst_8 : f32 to vector<4x16xf32>
    %22 = arith.mulf %19, %21 : vector<4x16xf32>
    %cst_9 = arith.constant 4.000000e-01 : f32
    %23 = vector.broadcast %cst_9 : f32 to vector<4x16xf32>
    %24 = arith.mulf %20, %23 : vector<4x16xf32>
    %25 = arith.addf %22, %24 : vector<4x16xf32>
    %26 = vector.extract_strided_slice %3 {offsets = [4, 0], sizes = [4, 16], strides = [1, 1]} : vector<32x16xf32> to vector<4x16xf32>
    %27 = vector.extract_strided_slice %3 {offsets = [8, 0], sizes = [4, 16], strides = [1, 1]} : vector<32x16xf32> to vector<4x16xf32>
    %cst_10 = arith.constant 0.13333334 : f32
    %28 = vector.broadcast %cst_10 : f32 to vector<4x16xf32>
    %29 = arith.mulf %26, %28 : vector<4x16xf32>
    %cst_11 = arith.constant 0.866666674 : f32
    %30 = vector.broadcast %cst_11 : f32 to vector<4x16xf32>
    %31 = arith.mulf %27, %30 : vector<4x16xf32>
    %32 = arith.addf %29, %31 : vector<4x16xf32>
    %33 = vector.extract_strided_slice %3 {offsets = [8, 0], sizes = [4, 16], strides = [1, 1]} : vector<32x16xf32> to vector<4x16xf32>
    %34 = vector.extract_strided_slice %3 {offsets = [12, 0], sizes = [4, 16], strides = [1, 1]} : vector<32x16xf32> to vector<4x16xf32>
    %cst_12 = arith.constant 0.666666686 : f32
    %35 = vector.broadcast %cst_12 : f32 to vector<4x16xf32>
    %36 = arith.mulf %33, %35 : vector<4x16xf32>
    %cst_13 = arith.constant 0.333333343 : f32
    %37 = vector.broadcast %cst_13 : f32 to vector<4x16xf32>
    %38 = arith.mulf %34, %37 : vector<4x16xf32>
    %39 = arith.addf %36, %38 : vector<4x16xf32>
    %40 = vector.extract_strided_slice %3 {offsets = [8, 0], sizes = [4, 16], strides = [1, 1]} : vector<32x16xf32> to vector<4x16xf32>
    %41 = vector.extract_strided_slice %3 {offsets = [12, 0], sizes = [4, 16], strides = [1, 1]} : vector<32x16xf32> to vector<4x16xf32>
    %cst_14 = arith.constant 2.000000e-01 : f32
    %42 = vector.broadcast %cst_14 : f32 to vector<4x16xf32>
    %43 = arith.mulf %40, %42 : vector<4x16xf32>
    %cst_15 = arith.constant 8.000000e-01 : f32
    %44 = vector.broadcast %cst_15 : f32 to vector<4x16xf32>
    %45 = arith.mulf %41, %44 : vector<4x16xf32>
    %46 = arith.addf %43, %45 : vector<4x16xf32>
    %47 = vector.extract_strided_slice %3 {offsets = [12, 0], sizes = [4, 16], strides = [1, 1]} : vector<32x16xf32> to vector<4x16xf32>
    %48 = vector.extract_strided_slice %3 {offsets = [16, 0], sizes = [4, 16], strides = [1, 1]} : vector<32x16xf32> to vector<4x16xf32>
    %cst_16 = arith.constant 0.733333349 : f32
    %49 = vector.broadcast %cst_16 : f32 to vector<4x16xf32>
    %50 = arith.mulf %47, %49 : vector<4x16xf32>
    %cst_17 = arith.constant 0.266666681 : f32
    %51 = vector.broadcast %cst_17 : f32 to vector<4x16xf32>
    %52 = arith.mulf %48, %51 : vector<4x16xf32>
    %53 = arith.addf %50, %52 : vector<4x16xf32>
    %54 = vector.extract_strided_slice %3 {offsets = [12, 0], sizes = [4, 16], strides = [1, 1]} : vector<32x16xf32> to vector<4x16xf32>
    %55 = vector.extract_strided_slice %3 {offsets = [16, 0], sizes = [4, 16], strides = [1, 1]} : vector<32x16xf32> to vector<4x16xf32>
    %cst_18 = arith.constant 0.266666681 : f32
    %56 = vector.broadcast %cst_18 : f32 to vector<4x16xf32>
    %57 = arith.mulf %54, %56 : vector<4x16xf32>
    %cst_19 = arith.constant 0.733333349 : f32
    %58 = vector.broadcast %cst_19 : f32 to vector<4x16xf32>
    %59 = arith.mulf %55, %58 : vector<4x16xf32>
    %60 = arith.addf %57, %59 : vector<4x16xf32>
    %61 = vector.extract_strided_slice %3 {offsets = [16, 0], sizes = [4, 16], strides = [1, 1]} : vector<32x16xf32> to vector<4x16xf32>
    %62 = vector.extract_strided_slice %3 {offsets = [20, 0], sizes = [4, 16], strides = [1, 1]} : vector<32x16xf32> to vector<4x16xf32>
    %cst_20 = arith.constant 8.000000e-01 : f32
    %63 = vector.broadcast %cst_20 : f32 to vector<4x16xf32>
    %64 = arith.mulf %61, %63 : vector<4x16xf32>
    %cst_21 = arith.constant 2.000000e-01 : f32
    %65 = vector.broadcast %cst_21 : f32 to vector<4x16xf32>
    %66 = arith.mulf %62, %65 : vector<4x16xf32>
    %67 = arith.addf %64, %66 : vector<4x16xf32>
    %68 = vector.extract_strided_slice %3 {offsets = [16, 0], sizes = [4, 16], strides = [1, 1]} : vector<32x16xf32> to vector<4x16xf32>
    %69 = vector.extract_strided_slice %3 {offsets = [20, 0], sizes = [4, 16], strides = [1, 1]} : vector<32x16xf32> to vector<4x16xf32>
    %cst_22 = arith.constant 0.333333343 : f32
    %70 = vector.broadcast %cst_22 : f32 to vector<4x16xf32>
    %71 = arith.mulf %68, %70 : vector<4x16xf32>
    %cst_23 = arith.constant 0.666666686 : f32
    %72 = vector.broadcast %cst_23 : f32 to vector<4x16xf32>
    %73 = arith.mulf %69, %72 : vector<4x16xf32>
    %74 = arith.addf %71, %73 : vector<4x16xf32>
    %75 = vector.extract_strided_slice %3 {offsets = [20, 0], sizes = [4, 16], strides = [1, 1]} : vector<32x16xf32> to vector<4x16xf32>
    %76 = vector.extract_strided_slice %3 {offsets = [24, 0], sizes = [4, 16], strides = [1, 1]} : vector<32x16xf32> to vector<4x16xf32>
    %cst_24 = arith.constant 0.866666674 : f32
    %77 = vector.broadcast %cst_24 : f32 to vector<4x16xf32>
    %78 = arith.mulf %75, %77 : vector<4x16xf32>
    %cst_25 = arith.constant 0.13333334 : f32
    %79 = vector.broadcast %cst_25 : f32 to vector<4x16xf32>
    %80 = arith.mulf %76, %79 : vector<4x16xf32>
    %81 = arith.addf %78, %80 : vector<4x16xf32>
    %82 = vector.extract_strided_slice %3 {offsets = [20, 0], sizes = [4, 16], strides = [1, 1]} : vector<32x16xf32> to vector<4x16xf32>
    %83 = vector.extract_strided_slice %3 {offsets = [24, 0], sizes = [4, 16], strides = [1, 1]} : vector<32x16xf32> to vector<4x16xf32>
    %cst_26 = arith.constant 4.000000e-01 : f32
    %84 = vector.broadcast %cst_26 : f32 to vector<4x16xf32>
    %85 = arith.mulf %82, %84 : vector<4x16xf32>
    %cst_27 = arith.constant 6.000000e-01 : f32
    %86 = vector.broadcast %cst_27 : f32 to vector<4x16xf32>
    %87 = arith.mulf %83, %86 : vector<4x16xf32>
    %88 = arith.addf %85, %87 : vector<4x16xf32>
    %89 = vector.extract_strided_slice %3 {offsets = [24, 0], sizes = [4, 16], strides = [1, 1]} : vector<32x16xf32> to vector<4x16xf32>
    %90 = vector.extract_strided_slice %3 {offsets = [28, 0], sizes = [4, 16], strides = [1, 1]} : vector<32x16xf32> to vector<4x16xf32>
    %cst_28 = arith.constant 0.933333337 : f32
    %91 = vector.broadcast %cst_28 : f32 to vector<4x16xf32>
    %92 = arith.mulf %89, %91 : vector<4x16xf32>
    %cst_29 = arith.constant 0.0666666701 : f32
    %93 = vector.broadcast %cst_29 : f32 to vector<4x16xf32>
    %94 = arith.mulf %90, %93 : vector<4x16xf32>
    %95 = arith.addf %92, %94 : vector<4x16xf32>
    %96 = vector.extract_strided_slice %3 {offsets = [24, 0], sizes = [4, 16], strides = [1, 1]} : vector<32x16xf32> to vector<4x16xf32>
    %97 = vector.extract_strided_slice %3 {offsets = [28, 0], sizes = [4, 16], strides = [1, 1]} : vector<32x16xf32> to vector<4x16xf32>
    %cst_30 = arith.constant 0.466666669 : f32
    %98 = vector.broadcast %cst_30 : f32 to vector<4x16xf32>
    %99 = arith.mulf %96, %98 : vector<4x16xf32>
    %cst_31 = arith.constant 0.533333361 : f32
    %100 = vector.broadcast %cst_31 : f32 to vector<4x16xf32>
    %101 = arith.mulf %97, %100 : vector<4x16xf32>
    %102 = arith.addf %99, %101 : vector<4x16xf32>
    %103 = vector.extract_strided_slice %3 {offsets = [28, 0], sizes = [4, 16], strides = [1, 1]} : vector<32x16xf32> to vector<4x16xf32>
    %104 = tpu.concatenate %4, %11, %18, %25, %32, %39, %46, %53, %60, %67, %74, %81, %88, %95, %102, %103 in 1 : vector<4x16xf32>, vector<4x16xf32>, vector<4x16xf32>, vector<4x16xf32>, vector<4x16xf32>, vector<4x16xf32>, vector<4x16xf32>, vector<4x16xf32>, vector<4x16xf32>, vector<4x16xf32>, vector<4x16xf32>, vector<4x16xf32>, vector<4x16xf32>, vector<4x16xf32>, vector<4x16xf32>, vector<4x16xf32> -> vector<4x256xf32>
    %c0_32 = arith.constant 0 : index
    %c0_33 = arith.constant 0 : index
    %c0_34 = arith.constant 0 : index
    %105 = vector.load %arg2[%c0_32, %c0_33, %c0_34] : memref<1x4x256xf32, #tpu.memory_space<vmem>>, vector<1x4x256xf32>
    %106 = vector.shape_cast %105 : vector<1x4x256xf32> to vector<4x256xf32>
    %107 = tpu.concatenate %104, %106 in 0 : vector<4x256xf32>, vector<4x256xf32> -> vector<8x256xf32>
    %c0_35 = arith.constant 0 : index
    %c0_36 = arith.constant 0 : index
    %108 = vector.load %arg4[%c0_35, %c0_36] : memref<9x256xf32, #tpu.memory_space<vmem>>, vector<9x256xf32>
    %c0_37 = arith.constant 0 : index
    %c0_38 = arith.constant 0 : index
    %109 = vector.load %arg5[%c0_37, %c0_38] : memref<8x72xbf16, #tpu.memory_space<vmem>>, vector<8x72xbf16>
    %c17_i32 = arith.constant 17 : i32
    %110 = tpu.dynamic_rotate %107 by %c17_i32 dim 1 : vector<8x256xf32>, i32 -> vector<8x256xf32>
    %111 = vector.extract_strided_slice %108 {offsets = [0, 0], sizes = [1, 256], strides = [1, 1]} : vector<9x256xf32> to vector<1x256xf32>
    %112 = vector.broadcast %111 : vector<1x256xf32> to vector<8x256xf32>
    %113 = arith.mulf %110, %112 : vector<8x256xf32>
    %c16_i32 = arith.constant 16 : i32
    %114 = tpu.dynamic_rotate %107 by %c16_i32 dim 1 : vector<8x256xf32>, i32 -> vector<8x256xf32>
    %115 = vector.extract_strided_slice %108 {offsets = [1, 0], sizes = [1, 256], strides = [1, 1]} : vector<9x256xf32> to vector<1x256xf32>
    %116 = vector.broadcast %115 : vector<1x256xf32> to vector<8x256xf32>
    %117 = arith.mulf %114, %116 : vector<8x256xf32>
    %c15_i32 = arith.constant 15 : i32
    %118 = tpu.dynamic_rotate %107 by %c15_i32 dim 1 : vector<8x256xf32>, i32 -> vector<8x256xf32>
    %119 = vector.extract_strided_slice %108 {offsets = [2, 0], sizes = [1, 256], strides = [1, 1]} : vector<9x256xf32> to vector<1x256xf32>
    %120 = vector.broadcast %119 : vector<1x256xf32> to vector<8x256xf32>
    %121 = arith.mulf %118, %120 : vector<8x256xf32>
    %c1_i32 = arith.constant 1 : i32
    %122 = tpu.dynamic_rotate %107 by %c1_i32 dim 1 : vector<8x256xf32>, i32 -> vector<8x256xf32>
    %123 = vector.extract_strided_slice %108 {offsets = [3, 0], sizes = [1, 256], strides = [1, 1]} : vector<9x256xf32> to vector<1x256xf32>
    %124 = vector.broadcast %123 : vector<1x256xf32> to vector<8x256xf32>
    %125 = arith.mulf %122, %124 : vector<8x256xf32>
    %126 = vector.extract_strided_slice %108 {offsets = [4, 0], sizes = [1, 256], strides = [1, 1]} : vector<9x256xf32> to vector<1x256xf32>
    %127 = vector.broadcast %126 : vector<1x256xf32> to vector<8x256xf32>
    %128 = arith.mulf %107, %127 : vector<8x256xf32>
    %c255_i32 = arith.constant 255 : i32
    %129 = tpu.dynamic_rotate %107 by %c255_i32 dim 1 : vector<8x256xf32>, i32 -> vector<8x256xf32>
    %130 = vector.extract_strided_slice %108 {offsets = [5, 0], sizes = [1, 256], strides = [1, 1]} : vector<9x256xf32> to vector<1x256xf32>
    %131 = vector.broadcast %130 : vector<1x256xf32> to vector<8x256xf32>
    %132 = arith.mulf %129, %131 : vector<8x256xf32>
    %c241_i32 = arith.constant 241 : i32
    %133 = tpu.dynamic_rotate %107 by %c241_i32 dim 1 : vector<8x256xf32>, i32 -> vector<8x256xf32>
    %134 = vector.extract_strided_slice %108 {offsets = [6, 0], sizes = [1, 256], strides = [1, 1]} : vector<9x256xf32> to vector<1x256xf32>
    %135 = vector.broadcast %134 : vector<1x256xf32> to vector<8x256xf32>
    %136 = arith.mulf %133, %135 : vector<8x256xf32>
    %c240_i32 = arith.constant 240 : i32
    %137 = tpu.dynamic_rotate %107 by %c240_i32 dim 1 : vector<8x256xf32>, i32 -> vector<8x256xf32>
    %138 = vector.extract_strided_slice %108 {offsets = [7, 0], sizes = [1, 256], strides = [1, 1]} : vector<9x256xf32> to vector<1x256xf32>
    %139 = vector.broadcast %138 : vector<1x256xf32> to vector<8x256xf32>
    %140 = arith.mulf %137, %139 : vector<8x256xf32>
    %c239_i32 = arith.constant 239 : i32
    %141 = tpu.dynamic_rotate %107 by %c239_i32 dim 1 : vector<8x256xf32>, i32 -> vector<8x256xf32>
    %142 = vector.extract_strided_slice %108 {offsets = [8, 0], sizes = [1, 256], strides = [1, 1]} : vector<9x256xf32> to vector<1x256xf32>
    %143 = vector.broadcast %142 : vector<1x256xf32> to vector<8x256xf32>
    %144 = arith.mulf %141, %143 : vector<8x256xf32>
    %145 = tpu.concatenate %113, %117, %121, %125, %128, %132, %136, %140, %144 in 0 : vector<8x256xf32>, vector<8x256xf32>, vector<8x256xf32>, vector<8x256xf32>, vector<8x256xf32>, vector<8x256xf32>, vector<8x256xf32>, vector<8x256xf32>, vector<8x256xf32> -> vector<72x256xf32>
    %146 = arith.truncf %145 : vector<72x256xf32> to vector<72x256xbf16>
    %cst_39 = arith.constant dense<0.000000e+00> : vector<8x256xf32>
    %147 = tpu.matmul %109, %146, %cst_39 {dimension_numbers = #tpu.dot_dimension_numbers<[1], [0], [0], [1], [0, 0, 1, 1], [], []>} : vector<8x72xbf16>, vector<72x256xbf16>, vector<8x256xf32> -> vector<8x256xf32>
    %c0_40 = arith.constant 0 : index
    %c0_41 = arith.constant 0 : index
    %148 = vector.load %arg6[%c0_40, %c0_41] : memref<8x1xf32, #tpu.memory_space<vmem>>, vector<8x1xf32>
    %149 = vector.broadcast %148 : vector<8x1xf32> to vector<8x256xf32>
    %150 = arith.addf %147, %149 : vector<8x256xf32>
    %cst_42 = arith.constant 0.000000e+00 : f32
    %151 = vector.broadcast %cst_42 : f32 to vector<8x256xf32>
    %152 = arith.maximumf %150, %151 : vector<8x256xf32>
    %c0_43 = arith.constant 0 : index
    %c0_44 = arith.constant 0 : index
    %153 = vector.load %arg7[%c0_43, %c0_44] : memref<8x72xbf16, #tpu.memory_space<vmem>>, vector<8x72xbf16>
    %c17_i32_45 = arith.constant 17 : i32
    %154 = tpu.dynamic_rotate %152 by %c17_i32_45 dim 1 : vector<8x256xf32>, i32 -> vector<8x256xf32>
    %155 = vector.extract_strided_slice %108 {offsets = [0, 0], sizes = [1, 256], strides = [1, 1]} : vector<9x256xf32> to vector<1x256xf32>
    %156 = vector.broadcast %155 : vector<1x256xf32> to vector<8x256xf32>
    %157 = arith.mulf %154, %156 : vector<8x256xf32>
    %c16_i32_46 = arith.constant 16 : i32
    %158 = tpu.dynamic_rotate %152 by %c16_i32_46 dim 1 : vector<8x256xf32>, i32 -> vector<8x256xf32>
    %159 = vector.extract_strided_slice %108 {offsets = [1, 0], sizes = [1, 256], strides = [1, 1]} : vector<9x256xf32> to vector<1x256xf32>
    %160 = vector.broadcast %159 : vector<1x256xf32> to vector<8x256xf32>
    %161 = arith.mulf %158, %160 : vector<8x256xf32>
    %c15_i32_47 = arith.constant 15 : i32
    %162 = tpu.dynamic_rotate %152 by %c15_i32_47 dim 1 : vector<8x256xf32>, i32 -> vector<8x256xf32>
    %163 = vector.extract_strided_slice %108 {offsets = [2, 0], sizes = [1, 256], strides = [1, 1]} : vector<9x256xf32> to vector<1x256xf32>
    %164 = vector.broadcast %163 : vector<1x256xf32> to vector<8x256xf32>
    %165 = arith.mulf %162, %164 : vector<8x256xf32>
    %c1_i32_48 = arith.constant 1 : i32
    %166 = tpu.dynamic_rotate %152 by %c1_i32_48 dim 1 : vector<8x256xf32>, i32 -> vector<8x256xf32>
    %167 = vector.extract_strided_slice %108 {offsets = [3, 0], sizes = [1, 256], strides = [1, 1]} : vector<9x256xf32> to vector<1x256xf32>
    %168 = vector.broadcast %167 : vector<1x256xf32> to vector<8x256xf32>
    %169 = arith.mulf %166, %168 : vector<8x256xf32>
    %170 = vector.extract_strided_slice %108 {offsets = [4, 0], sizes = [1, 256], strides = [1, 1]} : vector<9x256xf32> to vector<1x256xf32>
    %171 = vector.broadcast %170 : vector<1x256xf32> to vector<8x256xf32>
    %172 = arith.mulf %152, %171 : vector<8x256xf32>
    %c255_i32_49 = arith.constant 255 : i32
    %173 = tpu.dynamic_rotate %152 by %c255_i32_49 dim 1 : vector<8x256xf32>, i32 -> vector<8x256xf32>
    %174 = vector.extract_strided_slice %108 {offsets = [5, 0], sizes = [1, 256], strides = [1, 1]} : vector<9x256xf32> to vector<1x256xf32>
    %175 = vector.broadcast %174 : vector<1x256xf32> to vector<8x256xf32>
    %176 = arith.mulf %173, %175 : vector<8x256xf32>
    %c241_i32_50 = arith.constant 241 : i32
    %177 = tpu.dynamic_rotate %152 by %c241_i32_50 dim 1 : vector<8x256xf32>, i32 -> vector<8x256xf32>
    %178 = vector.extract_strided_slice %108 {offsets = [6, 0], sizes = [1, 256], strides = [1, 1]} : vector<9x256xf32> to vector<1x256xf32>
    %179 = vector.broadcast %178 : vector<1x256xf32> to vector<8x256xf32>
    %180 = arith.mulf %177, %179 : vector<8x256xf32>
    %c240_i32_51 = arith.constant 240 : i32
    %181 = tpu.dynamic_rotate %152 by %c240_i32_51 dim 1 : vector<8x256xf32>, i32 -> vector<8x256xf32>
    %182 = vector.extract_strided_slice %108 {offsets = [7, 0], sizes = [1, 256], strides = [1, 1]} : vector<9x256xf32> to vector<1x256xf32>
    %183 = vector.broadcast %182 : vector<1x256xf32> to vector<8x256xf32>
    %184 = arith.mulf %181, %183 : vector<8x256xf32>
    %c239_i32_52 = arith.constant 239 : i32
    %185 = tpu.dynamic_rotate %152 by %c239_i32_52 dim 1 : vector<8x256xf32>, i32 -> vector<8x256xf32>
    %186 = vector.extract_strided_slice %108 {offsets = [8, 0], sizes = [1, 256], strides = [1, 1]} : vector<9x256xf32> to vector<1x256xf32>
    %187 = vector.broadcast %186 : vector<1x256xf32> to vector<8x256xf32>
    %188 = arith.mulf %185, %187 : vector<8x256xf32>
    %189 = tpu.concatenate %157, %161, %165, %169, %172, %176, %180, %184, %188 in 0 : vector<8x256xf32>, vector<8x256xf32>, vector<8x256xf32>, vector<8x256xf32>, vector<8x256xf32>, vector<8x256xf32>, vector<8x256xf32>, vector<8x256xf32>, vector<8x256xf32> -> vector<72x256xf32>
    %190 = arith.truncf %189 : vector<72x256xf32> to vector<72x256xbf16>
    %cst_53 = arith.constant dense<0.000000e+00> : vector<8x256xf32>
    %191 = tpu.matmul %153, %190, %cst_53 {dimension_numbers = #tpu.dot_dimension_numbers<[1], [0], [0], [1], [0, 0, 1, 1], [], []>} : vector<8x72xbf16>, vector<72x256xbf16>, vector<8x256xf32> -> vector<8x256xf32>
    %c0_54 = arith.constant 0 : index
    %c0_55 = arith.constant 0 : index
    %192 = vector.load %arg8[%c0_54, %c0_55] : memref<8x1xf32, #tpu.memory_space<vmem>>, vector<8x1xf32>
    %193 = vector.broadcast %192 : vector<8x1xf32> to vector<8x256xf32>
    %194 = arith.addf %191, %193 : vector<8x256xf32>
    %cst_56 = arith.constant 0.000000e+00 : f32
    %195 = vector.broadcast %cst_56 : f32 to vector<8x256xf32>
    %196 = arith.maximumf %194, %195 : vector<8x256xf32>
    %c0_57 = arith.constant 0 : index
    %c0_58 = arith.constant 0 : index
    %c0_59 = arith.constant 0 : index
    %197 = vector.load %arg9[%c0_57, %c0_58, %c0_59] : memref<1x8x256xf32, #tpu.memory_space<vmem>>, vector<1x8x256xf32>
    %198 = vector.shape_cast %197 : vector<1x8x256xf32> to vector<8x256xf32>
    %199 = vector.shape_cast %196 : vector<8x256xf32> to vector<1x8x256xf32>
    tpu.vector_store %arg9[%c0_57, %c0_58, %c0_59], %199 {strides = array<i32>} : memref<1x8x256xf32, #tpu.memory_space<vmem>>, vector<1x8x256xf32>,
    return
  }
  func.func @transform_0(%arg0: i32) -> (i32, i32, i32) {
    %c0_i32 = arith.constant 0 : i32
    %c0_i32_0 = arith.constant 0 : i32
    %c0_i32_1 = arith.constant 0 : i32
    return %arg0, %c0_i32, %c0_i32_0 : i32, i32, i32
  }
  func.func @transform_1(%arg0: i32) -> (i32, i32, i32) {
    %c0_i32 = arith.constant 0 : i32
    %c0_i32_0 = arith.constant 0 : i32
    %c0_i32_1 = arith.constant 0 : i32
    return %arg0, %c0_i32, %c0_i32_0 : i32, i32, i32
  }
  func.func @transform_2(%arg0: i32) -> (i32, i32) {
    %c0_i32 = arith.constant 0 : i32
    %c0_i32_0 = arith.constant 0 : i32
    %c0_i32_1 = arith.constant 0 : i32
    return %c0_i32, %c0_i32_0 : i32, i32
  }
  func.func @transform_3(%arg0: i32) -> (i32, i32) {
    %c0_i32 = arith.constant 0 : i32
    %c0_i32_0 = arith.constant 0 : i32
    %c0_i32_1 = arith.constant 0 : i32
    return %c0_i32, %c0_i32_0 : i32, i32
  }
  func.func @transform_4(%arg0: i32) -> (i32, i32) {
    %c0_i32 = arith.constant 0 : i32
    %c0_i32_0 = arith.constant 0 : i32
    %c0_i32_1 = arith.constant 0 : i32
    return %c0_i32, %c0_i32_0 : i32, i32
  }
  func.func @transform_5(%arg0: i32) -> (i32, i32) {
    %c0_i32 = arith.constant 0 : i32
    %c0_i32_0 = arith.constant 0 : i32
    %c0_i32_1 = arith.constant 0 : i32
    return %c0_i32, %c0_i32_0 : i32, i32
  }
  func.func @transform_6(%arg0: i32) -> (i32, i32) {
    %c0_i32 = arith.constant 0 : i32
    %c0_i32_0 = arith.constant 0 : i32
    %c0_i32_1 = arith.constant 0 : i32
    return %c0_i32, %c0_i32_0 : i32, i32
  }
  func.func @transform_7(%arg0: i32) -> (i32, i32) {
    %c0_i32 = arith.constant 0 : i32
    %c0_i32_0 = arith.constant 0 : i32
    %c0_i32_1 = arith.constant 0 : i32
    return %c0_i32, %c0_i32_0 : i32, i32
  }
  func.func @transform_8(%arg0: i32) -> (i32, i32, i32) {
    %c0_i32 = arith.constant 0 : i32
    %c0_i32_0 = arith.constant 0 : i32
    %c0_i32_1 = arith.constant 0 : i32
    return %arg0, %c0_i32, %c0_i32_0 : i32, i32, i32
  }
}

</mosaic_0001>

<llo_original>
// kernel: tpu_custom_call.1
$region0: #{tpu_custom_call.1}
  #allocation0 [shape = 'u32[]', space=smem, size = 0x4, offset = 0x4, fixed_abs, tag = 'smem constant byte address 0x4 - core index']
  #allocation1 [shape = 'u32[144,128]{1,0:T(1,128)}', space=vmem, size = 0x12000, scoped, tag = 'internal scratch']
  %s0 = inlined_call_operand.vmem [shape: bf16[2,32,8], index: 0, kind: input, shape index: {}]
  %s1 = inlined_call_operand.vmem [shape: f32[2,4,256], index: 1, kind: input, shape index: {}]
  %s2 = inlined_call_operand.vmem [shape: bf16[8,16], index: 2, kind: input, shape index: {}]
  %s3 = inlined_call_operand.vmem [shape: f32[9,256], index: 3, kind: input, shape index: {}]
  %s4 = inlined_call_operand.vmem [shape: bf16[8,72], index: 4, kind: input, shape index: {}]
  %s5 = inlined_call_operand.vmem [shape: f32[8,1], index: 5, kind: input, shape index: {}]
  %s6 = inlined_call_operand.vmem [shape: bf16[8,72], index: 6, kind: input, shape index: {}]
  %s7 = inlined_call_operand.vmem [shape: f32[8,1], index: 7, kind: input, shape index: {}]
  %s8 = inlined_call_operand.hbm [shape: f32[2,8,256], index: 8, kind: output, shape index: {}]
  %s9 = sld [smem:[#allocation0]]
  $region65: #{tpu_custom_call.1} parent=0
    _
  %s11 = ssub.s32 1, %s9
  %s12 = scalar_select 0, %s11, %s9
  $region1: #{tpu_custom_call.1} parent=0
    #allocation2 [shape = 'u8[16384]{0}', space=vmem, size = 0x4000, scoped, tag = 'output window, operand 0']
    #allocation3 [shape = 's32[2]{0}', space=sflag, size = 0x8, scoped, tag = 'scoped memory for tpu_custom_call.1']
    %13 = vsyncpa [#allocation3], 0
    %s14 = scalar_lea.sflag [#allocation3], 1
    %15 = vsyncpa %s14, 0
    loop: start=0, step=1, limit=4
    $region2: #{tpu_custom_call.1} parent=1 // loop_pre_header
      _
    $region3: #{tpu_custom_call.1} parent=1 // loop_header
      %s17 = sphi 0, %s21
      %p18 = scmp.ge.s32.totalorder %s17, 4
      %s27 = sphi 0, %s29
      %s30 = sphi 0, %s27
      %s31 = sphi 0, %s30
      %s47 = sphi 0, %s31
      %s53 = sphi 0, %s55
      %s56 = sphi 0, %s53
      %s57 = sphi 0, %s56
      %s73 = sphi 0, %s57
      %s77 = sphi 0, %s77
      %s79 = sphi 0, %s77
      %s80 = sphi 0, %s79
      %s94 = sphi 0, %s80
      %s98 = sphi 0, %s98
      %s100 = sphi 0, %s98
      %s101 = sphi 0, %s100
      %s115 = sphi 0, %s101
      %s119 = sphi 0, %s119
      %s121 = sphi 0, %s119
      %s122 = sphi 0, %s121
      %s136 = sphi 0, %s122
      %s140 = sphi 0, %s140
      %s142 = sphi 0, %s140
      %s143 = sphi 0, %s142
      %s157 = sphi 0, %s143
      %s161 = sphi 0, %s161
      %s163 = sphi 0, %s161
      %s164 = sphi 0, %s163
      %s178 = sphi 0, %s164
      %s182 = sphi 0, %s182
      %s184 = sphi 0, %s182
      %s185 = sphi 0, %s184
      %s199 = sphi 0, %s185
      %s205 = sphi 0, %s207
      %s208 = sphi 0, %s205
      %s209 = sphi 0, %s208
      %s225 = sphi 0, %s209
    $region4: #{tpu_custom_call.1} parent=1 // loop_header_branch
      %20 = sbr.rel (%p18) target = $region8
    $region5: #{tpu_custom_call.1} parent=1 // loop_body
      %s22 = ssub.s32 %s17, 1
      %s23 = ssub.s32 %s17, 2
      %s24 = sadd.s32 %s17, 1
      %s25 = ssub.s32 %s17, %s24
      %p26 = scmp.eq.s32.totalorder %s25, 0
      %s28 = sadd.s32 %s27, 1
      %s29 = scalar_select %p26, %s27, %s28
      %p32 = pneg %p26
      %p33 = scmp.eq.s32.totalorder %s17, 1
      %p34 = por %p32, %p33
      %p35 = scmp.ne.s32.totalorder %s27, %s30
      %p36 = scmp.eq.s32.totalorder %s17, 0
      %p37 = por %p35, %p36
      %p38 = scmp.ne.s32.totalorder %s27, %s30
      %p39 = scmp.eq.s32.totalorder %s22, 1
      %p40 = por %p38, %p39
      %p41 = scmp.ne.s32.totalorder %s30, %s31
      %p42 = scmp.eq.s32.totalorder %s22, 0
      %p43 = por %p41, %p42
      %p44 = scmp.ne.s32.totalorder %s30, %s31
      %p45 = scmp.eq.s32.totalorder %s23, 1
      %p46 = por %p44, %p45
      %p48 = scmp.ne.s32.totalorder %s31, %s47
      %p49 = scmp.eq.s32.totalorder %s23, 0
      %p50 = por %p48, %p49
      %s51 = ssub.s32 %s17, %s24
      %p52 = scmp.eq.s32.totalorder %s51, 0
      %s54 = sadd.s32 %s53, 1
      %s55 = scalar_select %p52, %s53, %s54
      %p58 = pneg %p52
      %p59 = scmp.eq.s32.totalorder %s17, 1
      %p60 = por %p58, %p59
      %p61 = scmp.ne.s32.totalorder %s53, %s56
      %p62 = scmp.eq.s32.totalorder %s17, 0
      %p63 = por %p61, %p62
      %p64 = scmp.ne.s32.totalorder %s53, %s56
      %p65 = scmp.eq.s32.totalorder %s22, 1
      %p66 = por %p64, %p65
      %p67 = scmp.ne.s32.totalorder %s56, %s57
      %p68 = scmp.eq.s32.totalorder %s22, 0
      %p69 = por %p67, %p68
      %p70 = scmp.ne.s32.totalorder %s56, %s57
      %p71 = scmp.eq.s32.totalorder %s23, 1
      %p72 = por %p70, %p71
      %p74 = scmp.ne.s32.totalorder %s57, %s73
      %p75 = scmp.eq.s32.totalorder %s23, 0
      %p76 = por %p74, %p75
      %s78 = sadd.s32 %s77, 1
      %p81 = scmp.eq.s32.totalorder %s17, 1
      %p82 = scmp.ne.s32.totalorder %s77, %s79
      %p83 = scmp.eq.s32.totalorder %s17, 0
      %p84 = por %p82, %p83
      %p85 = scmp.ne.s32.totalorder %s77, %s79
      %p86 = scmp.eq.s32.totalorder %s22, 1
      %p87 = por %p85, %p86
      %p88 = scmp.ne.s32.totalorder %s79, %s80
      %p89 = scmp.eq.s32.totalorder %s22, 0
      %p90 = por %p88, %p89
      %p91 = scmp.ne.s32.totalorder %s79, %s80
      %p92 = scmp.eq.s32.totalorder %s23, 1
      %p93 = por %p91, %p92
      %p95 = scmp.ne.s32.totalorder %s80, %s94
      %p96 = scmp.eq.s32.totalorder %s23, 0
      %p97 = por %p95, %p96
      %s99 = sadd.s32 %s98, 1
      %p102 = scmp.eq.s32.totalorder %s17, 1
      %p103 = scmp.ne.s32.totalorder %s98, %s100
      %p104 = scmp.eq.s32.totalorder %s17, 0
      %p105 = por %p103, %p104
      %p106 = scmp.ne.s32.totalorder %s98, %s100
      %p107 = scmp.eq.s32.totalorder %s22, 1
      %p108 = por %p106, %p107
      %p109 = scmp.ne.s32.totalorder %s100, %s101
      %p110 = scmp.eq.s32.totalorder %s22, 0
      %p111 = por %p109, %p110
      %p112 = scmp.ne.s32.totalorder %s100, %s101
      %p113 = scmp.eq.s32.totalorder %s23, 1
      %p114 = por %p112, %p113
      %p116 = scmp.ne.s32.totalorder %s101, %s115
      %p117 = scmp.eq.s32.totalorder %s23, 0
      %p118 = por %p116, %p117
      %s120 = sadd.s32 %s119, 1
      %p123 = scmp.eq.s32.totalorder %s17, 1
      %p124 = scmp.ne.s32.totalorder %s119, %s121
      %p125 = scmp.eq.s32.totalorder %s17, 0
      %p126 = por %p124, %p125
      %p127 = scmp.ne.s32.totalorder %s119, %s121
      %p128 = scmp.eq.s32.totalorder %s22, 1
      %p129 = por %p127, %p128
      %p130 = scmp.ne.s32.totalorder %s121, %s122
      %p131 = scmp.eq.s32.totalorder %s22, 0
      %p132 = por %p130, %p131
      %p133 = scmp.ne.s32.totalorder %s121, %s122
      %p134 = scmp.eq.s32.totalorder %s23, 1
      %p135 = por %p133, %p134
      %p137 = scmp.ne.s32.totalorder %s122, %s136
      %p138 = scmp.eq.s32.totalorder %s23, 0
      %p139 = por %p137, %p138
      %s141 = sadd.s32 %s140, 1
      %p144 = scmp.eq.s32.totalorder %s17, 1
      %p145 = scmp.ne.s32.totalorder %s140, %s142
      %p146 = scmp.eq.s32.totalorder %s17, 0
      %p147 = por %p145, %p146
      %p148 = scmp.ne.s32.totalorder %s140, %s142
      %p149 = scmp.eq.s32.totalorder %s22, 1
      %p150 = por %p148, %p149
      %p151 = scmp.ne.s32.totalorder %s142, %s143
      %p152 = scmp.eq.s32.totalorder %s22, 0
      %p153 = por %p151, %p152
      %p154 = scmp.ne.s32.totalorder %s142, %s143
      %p155 = scmp.eq.s32.totalorder %s23, 1
      %p156 = por %p154, %p155
      %p158 = scmp.ne.s32.totalorder %s143, %s157
      %p159 = scmp.eq.s32.totalorder %s23, 0
      %p160 = por %p158, %p159
      %s162 = sadd.s32 %s161, 1
      %p165 = scmp.eq.s32.totalorder %s17, 1
      %p166 = scmp.ne.s32.totalorder %s161, %s163
      %p167 = scmp.eq.s32.totalorder %s17, 0
      %p168 = por %p166, %p167
      %p169 = scmp.ne.s32.totalorder %s161, %s163
      %p170 = scmp.eq.s32.totalorder %s22, 1
      %p171 = por %p169, %p170
      %p172 = scmp.ne.s32.totalorder %s163, %s164
      %p173 = scmp.eq.s32.totalorder %s22, 0
      %p174 = por %p172, %p173
      %p175 = scmp.ne.s32.totalorder %s163, %s164
      %p176 = scmp.eq.s32.totalorder %s23, 1
      %p177 = por %p175, %p176
      %p179 = scmp.ne.s32.totalorder %s164, %s178
      %p180 = scmp.eq.s32.totalorder %s23, 0
      %p181 = por %p179, %p180
      %s183 = sadd.s32 %s182, 1
      %p186 = scmp.eq.s32.totalorder %s17, 1
      %p187 = scmp.ne.s32.totalorder %s182, %s184
      %p188 = scmp.eq.s32.totalorder %s17, 0
      %p189 = por %p187, %p188
      %p190 = scmp.ne.s32.totalorder %s182, %s184
      %p191 = scmp.eq.s32.totalorder %s22, 1
      %p192 = por %p190, %p191
      %p193 = scmp.ne.s32.totalorder %s184, %s185
      %p194 = scmp.eq.s32.totalorder %s22, 0
      %p195 = por %p193, %p194
      %p196 = scmp.ne.s32.totalorder %s184, %s185
      %p197 = scmp.eq.s32.totalorder %s23, 1
      %p198 = por %p196, %p197
      %p200 = scmp.ne.s32.totalorder %s185, %s199
      %p201 = scmp.eq.s32.totalorder %s23, 0
      %p202 = por %p200, %p201
      %s203 = ssub.s32 %s17, %s24
      %p204 = scmp.eq.s32.totalorder %s203, 0
      %s206 = sadd.s32 %s205, 1
      %s207 = scalar_select %p204, %s205, %s206
      %p210 = pneg %p204
      %p211 = scmp.eq.s32.totalorder %s17, 1
      %p212 = por %p210, %p211
      %p213 = scmp.ne.s32.totalorder %s205, %s208
      %p214 = scmp.eq.s32.totalorder %s17, 0
      %p215 = por %p213, %p214
      %p216 = scmp.ne.s32.totalorder %s205, %s208
      %p217 = scmp.eq.s32.totalorder %s22, 1
      %p218 = por %p216, %p217
      %p219 = scmp.ne.s32.totalorder %s208, %s209
      %p220 = scmp.eq.s32.totalorder %s22, 0
      %p221 = por %p219, %p220
      %p222 = scmp.ne.s32.totalorder %s208, %s209
      %p223 = scmp.eq.s32.totalorder %s23, 1
      %p224 = por %p222, %p223
      %p226 = scmp.ne.s32.totalorder %s209, %s225
      %p227 = scmp.eq.s32.totalorder %s23, 0
      %p228 = por %p226, %p227
      %p229 = scmp.le.s32.totalorder 1, %s17
      %p230 = scmp.lt.s32.totalorder %s17, 3
      %p231 = pnand %p229, %p230
      %p232 = pneg %p231
      // Predicated region
      $region9: #{tpu_custom_call.1} parent=5 // pred_check
        _
      $region10: #{tpu_custom_call.1} parent=5 // pred_check_branch
        %234 = sbr.rel (%p231) target = $region12
      $region11: #{tpu_custom_call.1} parent=5 // pred_region
        %s235 = ssub.s32 %s17, 1
        // Predicated region
        $region13: #{tpu_custom_call.1} parent=11 // pred_check
          %p236 = pneg %p90
        $region14: #{tpu_custom_call.1} parent=11 // pred_check_branch
          %238 = sbr.rel (%p236) target = $region16
        $region15: #{tpu_custom_call.1} parent=11 // pred_region
          _
        $region16: #{tpu_custom_call.1} parent=11 // pred_fallthru
          _
        // Predicated region
        $region17: #{tpu_custom_call.1} parent=11 // pred_check
          %p239 = pneg %p111
        $region18: #{tpu_custom_call.1} parent=11 // pred_check_branch
          %241 = sbr.rel (%p239) target = $region20
        $region19: #{tpu_custom_call.1} parent=11 // pred_region
          _
        $region20: #{tpu_custom_call.1} parent=11 // pred_fallthru
          _
        // Predicated region
        $region21: #{tpu_custom_call.1} parent=11 // pred_check
          %p242 = pneg %p132
        $region22: #{tpu_custom_call.1} parent=11 // pred_check_branch
          %244 = sbr.rel (%p242) target = $region24
        $region23: #{tpu_custom_call.1} parent=11 // pred_region
          _
        $region24: #{tpu_custom_call.1} parent=11 // pred_fallthru
          _
        // Predicated region
        $region25: #{tpu_custom_call.1} parent=11 // pred_check
          %p245 = pneg %p153
        $region26: #{tpu_custom_call.1} parent=11 // pred_check_branch
          %247 = sbr.rel (%p245) target = $region28
        $region27: #{tpu_custom_call.1} parent=11 // pred_region
          _
        $region28: #{tpu_custom_call.1} parent=11 // pred_fallthru
          _
        // Predicated region
        $region29: #{tpu_custom_call.1} parent=11 // pred_check
          %p248 = pneg %p174
        $region30: #{tpu_custom_call.1} parent=11 // pred_check_branch
          %250 = sbr.rel (%p248) target = $region32
        $region31: #{tpu_custom_call.1} parent=11 // pred_region
          _
        $region32: #{tpu_custom_call.1} parent=11 // pred_fallthru
          _
        // Predicated region
        $region33: #{tpu_custom_call.1} parent=11 // pred_check
          %p251 = pneg %p195
        $region34: #{tpu_custom_call.1} parent=11 // pred_check_branch
          %253 = sbr.rel (%p251) target = $region36
        $region35: #{tpu_custom_call.1} parent=11 // pred_region
          _
        $region36: #{tpu_custom_call.1} parent=11 // pred_fallthru
          _
      $region12: #{tpu_custom_call.1} parent=5 // pred_fallthru
        _
      %p254 = scmp.lt.s32.totalorder %s17, 2
      // Predicated region
      $region37: #{tpu_custom_call.1} parent=5 // pred_check
        %p255 = pneg %p254
      $region38: #{tpu_custom_call.1} parent=5 // pred_check_branch
        %257 = sbr.rel (%p255) target = $region40
      $region39: #{tpu_custom_call.1} parent=5 // pred_region
        // Predicated region
        $region41: #{tpu_custom_call.1} parent=39 // pred_check
          %p258 = pneg %p37
        $region42: #{tpu_custom_call.1} parent=39 // pred_check_branch
          %260 = sbr.rel (%p258) target = $region44
        $region43: #{tpu_custom_call.1} parent=39 // pred_region
          %p261 = scmp.lt.s32.totalorder %s17, 1
          %s262 = scalar_select %p261, %s17, 1
          %s263 = smul.addr %s262, 4
          %s264 = smul.addr %s263, 4
          %s265 = scalar_lea.vmem %s0, %s264
        $region44: #{tpu_custom_call.1} parent=39 // pred_fallthru
          _
        // Predicated region
        $region45: #{tpu_custom_call.1} parent=39 // pred_check
          %p266 = pneg %p63
        $region46: #{tpu_custom_call.1} parent=39 // pred_check_branch
          %268 = sbr.rel (%p266) target = $region48
        $region47: #{tpu_custom_call.1} parent=39 // pred_region
          %p269 = scmp.lt.s32.totalorder %s17, 1
          %s270 = scalar_select %p269, %s17, 1
          %s271 = smul.addr %s270, 2
          %s272 = smul.addr %s271, 4
          %s273 = scalar_lea.vmem %s1, %s272
        $region48: #{tpu_custom_call.1} parent=39 // pred_fallthru
          _
      $region40: #{tpu_custom_call.1} parent=5 // pred_fallthru
        _
      %p274 = scmp.le.s32.totalorder 1, %s17
      %p275 = scmp.lt.s32.totalorder %s17, 3
      %p276 = pnand %p274, %p275
      %p277 = pneg %p276
      // Predicated region
      $region49: #{tpu_custom_call.1} parent=5 // pred_check
        _
      $region50: #{tpu_custom_call.1} parent=5 // pred_check_branch
        %279 = sbr.rel (%p276) target = $region52
      $region51: #{tpu_custom_call.1} parent=5 // pred_region
        %s280 = ssub.s32 %s17, 1
        %p281 = scmp.lt.s32.totalorder %s22, 1
        %s282 = scalar_select %p281, %s22, 1
        %s283 = smul.addr %s282, 4
        %s284 = smul.addr %s283, 4
        %s285 = scalar_lea.vmem %s0, %s284
        %p286 = pneg %p43
        %p287 = pneg %p40
        %p288 = scmp.lt.s32.totalorder %s22, 1
        %s289 = scalar_select %p288, %s22, 1
        %s290 = smul.addr %s289, 2
        %s291 = smul.addr %s290, 4
        %s292 = scalar_lea.vmem %s1, %s291
        %p293 = pneg %p69
        %p294 = pneg %p66
        %p295 = pneg %p90
        %p296 = pneg %p87
        %p297 = pneg %p111
        %p298 = pneg %p108
        %p299 = pneg %p132
        %p300 = pneg %p129
        %p301 = pneg %p153
        %p302 = pneg %p150
        %p303 = pneg %p174
        %p304 = pneg %p171
        %p305 = pneg %p195
        %p306 = pneg %p192
        %p307 = pneg %p221
        %p308 = pneg %p218
        %s309 = sand.u32 %s208, 1
        %s310 = scalar_lea.sflag [#allocation3], %s309
        %s311 = sand.u32 %s208, 1
        %s312 = smul.addr %s311, 16
        %s313 = scalar_lea.vmem [#allocation2], %s312
        %p314 = scmp.lt.s32.totalorder %s22, 1
        %s315 = scalar_select %p314, %s22, 1
        %s316 = smul.addr %s315, 4
        %s317 = smul.addr %s316, 4
        %s318 = scalar_lea.vmem %s0, %s317
        %p319 = scmp.lt.s32.totalorder %s22, 1
        %s320 = scalar_select %p319, %s22, 1
        %s321 = smul.addr %s320, 2
        %s322 = smul.addr %s321, 4
        %s323 = scalar_lea.vmem %s1, %s322
        %v325 = vld [vmem:[%s318] sm:$0xf]
        %v326 = vld [vmem:[%s318 + $0x4] sm:$0xf]
        %v327 = vld [vmem:[%s318 + $0x8] sm:$0xf]
        %v328 = vld [vmem:[%s318 + $0xc] sm:$0xf]
        %v329 = vld [vmem:[%s2] sm:$0xf]
        %v334 = vunpack.c.l.b16 %v325
        %v335 = vunpack.c.l.b16 %v326
        %v336 = vunpack.c.l.b16 %v327
        %v337 = vunpack.c.l.b16 %v328
        %v338 = vpack.c.b16 %v335, %v334
        %v339 = vpack.c.b16 %v337, %v336
        %vm340 = vcmask 64512
        %v342 = vsel %vm340, %v338, 0
        %v345 = vsel %vm340, %v339, 0
        %vm347 = vcmask 1043456
        %v349 = vsel %vm347, %v329, 0
        %351 = vmatprep.subr.bf16.mxu0 0
        %352 = vmatpush1.bf16.msra.mxu0 %v349
        %353 = vmatprep.subr.bf16.mxu0 0
        %354 = vmatpush1.bf16.msra.mxu0 0
        %355 = vmatprep.subr.bf16.mxu0 0
        %356 = vmatpush1.bf16.msra.mxu0 0
        %357 = vmatprep.subr.bf16.mxu0 0
        %358 = vmatpush1.bf16.msra.mxu0 0
        %359 = vmatprep.subr.bf16.mxu0 0
        %360 = vmatpush1.bf16.msra.mxu0 0
        %361 = vmatprep.subr.bf16.mxu0 0
        %362 = vmatpush1.bf16.msra.mxu0 0
        %363 = vmatprep.subr.bf16.mxu0 0
        %364 = vmatpush1.bf16.msra.mxu0 0
        %365 = vmatprep.subr.bf16.mxu0 0
        %366 = vmatpush1.bf16.msra.mxu0 0
        %367 = vmatprep.subr.bf16.mxu0 0
        %368 = vmatpush1.bf16.msra.mxu0 0
        %369 = vmatprep.subr.bf16.mxu0 0
        %370 = vmatpush1.bf16.msra.mxu0 0
        %371 = vmatprep.subr.bf16.mxu0 0
        %372 = vmatpush1.bf16.msra.mxu0 0
        %373 = vmatprep.subr.bf16.mxu0 0
        %374 = vmatpush1.bf16.msra.mxu0 0
        %375 = vmatprep.subr.bf16.mxu0 0
        %376 = vmatpush1.bf16.msra.mxu0 0
        %377 = vmatprep.subr.bf16.mxu0 0
        %378 = vmatpush1.bf16.msra.mxu0 0
        %379 = vmatprep.subr.bf16.mxu0 0
        %380 = vmatpush1.bf16.msra.mxu0 0
        %381 = vmatprep.subr.bf16.mxu0 0
        %382 = vmatpush1.bf16.msra.mxu0 0
        %383 = vmatprep.mubr.bf16.mxu0 0
        %384 = vmatmul.mubr.bf16.gmra.mrb[0].mxu0 %v342
        %v385 = vpop.f32.mrb[0].mxu0
        %v386 = vadd.f32 0.0, %v385
        %v387 = vpop.f32.mrb[0].mxu0
        %v388 = vpop.f32.mrb[0].mxu0
        %v389 = vadd.f32 0.0, %v388
        %v390 = vpop.f32.mrb[0].mxu0
        %391 = vmatprep.mubr.bf16.mxu0 0
        %392 = vmatmul.mubr.bf16.gmra.mrb[0].mxu0 %v345
        %v393 = vpop.f32.mrb[0].mxu0
        %v394 = vadd.f32 0.0, %v393
        %v395 = vpop.f32.mrb[0].mxu0
        %v396 = vpop.f32.mrb[0].mxu0
        %v397 = vadd.f32 0.0, %v396
        %v398 = vpop.f32.mrb[0].mxu0
        %399 = vdwg.mxu0
        %v400 = vmul.f32 %v386, 0.53333336
        %v401 = vmul.f32 %v386, 0.46666667
        %v403 = vrot.slane %v401, 4
        %v405 = vadd.f32 %v400, %v403
        %v406 = vmul.f32 %v386, 0.06666667
        %v407 = vmul.f32 %v386, 0.93333334
        %v409 = vrot.slane %v407, 4
        %v411 = vadd.f32 %v406, %v409
        %v412 = vmul.f32 %v386, 0.6
        %v413 = vmul.f32 %v389, 0.4
        %v415 = vrot.slane %v413, 4
        %v417 = vadd.f32 %v412, %v415
        %v418 = vmul.f32 %v386, 0.13333334
        %v419 = vmul.f32 %v389, 0.8666667
        %v421 = vrot.slane %v419, 4
        %v423 = vadd.f32 %v418, %v421
        %v424 = vmul.f32 %v389, 0.6666667
        %v425 = vmul.f32 %v389, 0.33333334
        %v427 = vrot.slane %v425, 4
        %v429 = vadd.f32 %v424, %v427
        %v430 = vmul.f32 %v389, 0.2
        %v431 = vmul.f32 %v389, 0.8
        %v433 = vrot.slane %v431, 4
        %v435 = vadd.f32 %v430, %v433
        %v436 = vmul.f32 %v389, 0.73333335
        %v437 = vmul.f32 %v394, 0.26666668
        %v439 = vrot.slane %v437, 4
        %v441 = vadd.f32 %v436, %v439
        %v442 = vmul.f32 %v389, 0.26666668
        %v443 = vmul.f32 %v394, 0.73333335
        %v445 = vrot.slane %v443, 4
        %v447 = vadd.f32 %v442, %v445
        %v448 = vmul.f32 %v394, 0.8
        %v449 = vmul.f32 %v394, 0.2
        %v451 = vrot.slane %v449, 4
        %v453 = vadd.f32 %v448, %v451
        %v454 = vmul.f32 %v394, 0.33333334
        %v455 = vmul.f32 %v394, 0.6666667
        %v457 = vrot.slane %v455, 4
        %v459 = vadd.f32 %v454, %v457
        %v460 = vmul.f32 %v394, 0.8666667
        %v461 = vmul.f32 %v397, 0.13333334
        %v463 = vrot.slane %v461, 4
        %v465 = vadd.f32 %v460, %v463
        %v466 = vmul.f32 %v394, 0.4
        %v467 = vmul.f32 %v397, 0.6
        %v469 = vrot.slane %v467, 4
        %v471 = vadd.f32 %v466, %v469
        %v472 = vmul.f32 %v397, 0.93333334
        %v473 = vmul.f32 %v397, 0.06666667
        %v475 = vrot.slane %v473, 4
        %v477 = vadd.f32 %v472, %v475
        %v478 = vmul.f32 %v397, 0.46666667
        %v479 = vmul.f32 %v397, 0.53333336
        %v481 = vrot.slane %v479, 4
        %v483 = vadd.f32 %v478, %v481
        %485 = vrot.lane.b32.xlu0 %v405, 16
        %v486 = vpop.permute.xlu0 %485
        %489 = vrot.lane.b32.xlu0 %v411, 32
        %v490 = vpop.permute.xlu0 %489
        %v493 = vrot.slane %v417, 4
        %494 = vrot.lane.b32.xlu0 %v493, 48
        %v495 = vpop.permute.xlu0 %494
        %v498 = vrot.slane %v423, 4
        %499 = vrot.lane.b32.xlu0 %v498, 64
        %v500 = vpop.permute.xlu0 %499
        %503 = vrot.lane.b32.xlu0 %v429, 80
        %v504 = vpop.permute.xlu0 %503
        %507 = vrot.lane.b32.xlu0 %v435, 96
        %v508 = vpop.permute.xlu0 %507
        %v511 = vrot.slane %v441, 4
        %512 = vrot.lane.b32.xlu0 %v511, 112
        %v513 = vpop.permute.xlu0 %512
        %v516 = vrot.slane %v447, 4
        %519 = vrot.lane.b32.xlu0 %v453, 16
        %v520 = vpop.permute.xlu0 %519
        %523 = vrot.lane.b32.xlu0 %v459, 32
        %v524 = vpop.permute.xlu0 %523
        %v527 = vrot.slane %v465, 4
        %528 = vrot.lane.b32.xlu0 %v527, 48
        %v529 = vpop.permute.xlu0 %528
        %v532 = vrot.slane %v471, 4
        %533 = vrot.lane.b32.xlu0 %v532, 64
        %v534 = vpop.permute.xlu0 %533
        %537 = vrot.lane.b32.xlu0 %v477, 80
        %v538 = vpop.permute.xlu0 %537
        %541 = vrot.lane.b32.xlu0 %v483, 96
        %v542 = vpop.permute.xlu0 %541
        %v545 = vrot.slane %v397, 4
        %546 = vrot.lane.b32.xlu0 %v545, 112
        %v547 = vpop.permute.xlu0 %546
        %vm549 = vcmask 130048
        %v550 = vsel %vm549, %v386, %v486
        %vm551 = vcmask 261120
        %v552 = vsel %vm551, %v550, %v490
        %vm553 = vcmask 392192
        %v554 = vsel %vm553, %v552, %v495
        %vm555 = vcmask 523264
        %v556 = vsel %vm555, %v554, %v500
        %vm557 = vcmask 654336
        %v558 = vsel %vm557, %v556, %v504
        %vm559 = vcmask 785408
        %v560 = vsel %vm559, %v558, %v508
        %vm561 = vcmask 916480
        %v562 = vsel %vm561, %v560, %v513
        %v563 = vsel %vm549, %v516, %v520
        %v564 = vsel %vm551, %v563, %v524
        %v565 = vsel %vm553, %v564, %v529
        %v566 = vsel %vm555, %v565, %v534
        %v567 = vsel %vm557, %v566, %v538
        %v568 = vsel %vm559, %v567, %v542
        %v569 = vsel %vm561, %v568, %v547
        %v570 = vld [vmem:[%s323] sm:$0xff]
        %v572 = vcombine.low %v570, %v570
        %v574 = vsel %vm347, %v562, %v572
        %v575 = vsel %vm347, %v569, %v570
        %v576 = vld [vmem:[%s3] sm:$0xff]
        %v577 = vld [vmem:[%s3 + $0x8] sm:$0xff]
        %v578 = vld [vmem:[%s3 + $0x10] sm:$0x1]
        %v579 = vld [vmem:[%s3 + $0x18] sm:$0x1]
        %v580 = vld [vmem:[%s4] sm:$0xf]
        %581 = vrot.lane.b32.xlu0 %v574, 17
        %v582 = vpop.permute.xlu0 %581
        %583 = vrot.lane.b32.xlu0 %v575, 17
        %v584 = vpop.permute.xlu0 %583
        %v585 = vlaneseq
        %v586 = vand.u32 %v585, 127
        %vm587 = vcmp.lt.s32.totalorder %v586, 17
        %v588 = vsel %vm587, %v582, %v584
        %v589 = vsel %vm587, %v584, %v582
        %v590 = vlaneseq
        %v591 = vshrl.u32 %v590, 7
        %v592 = vsub.s32 0, %v591
        %v593 = vrot.slane %v576, %v592
        %v594 = vlaneseq
        %v595 = vshrl.u32 %v594, 7
        %v596 = vsub.s32 0, %v595
        %v597 = vrot.slane %v577, %v596
        %v598 = vmul.f32 %v589, %v593
        %v599 = vmul.f32 %v588, %v597
        %600 = vrot.lane.b32.xlu0 %v574, 16
        %v601 = vpop.permute.xlu0 %600
        %602 = vrot.lane.b32.xlu0 %v575, 16
        %v603 = vpop.permute.xlu0 %602
        %vm604 = vcmp.lt.s32.totalorder %v586, 16
        %v605 = vsel %vm604, %v601, %v603
        %v606 = vsel %vm604, %v603, %v601
        %v607 = vlaneseq
        %v608 = vshrl.u32 %v607, 7
        %v609 = vsub.s32 1, %v608
        %v610 = vrot.slane %v576, %v609
        %v611 = vlaneseq
        %v612 = vshrl.u32 %v611, 7
        %v613 = vsub.s32 1, %v612
        %v614 = vrot.slane %v577, %v613
        %v615 = vmul.f32 %v606, %v610
        %v616 = vmul.f32 %v605, %v614
        %617 = vrot.lane.b32.xlu0 %v574, 15
        %v618 = vpop.permute.xlu0 %617
        %619 = vrot.lane.b32.xlu0 %v575, 15
        %v620 = vpop.permute.xlu0 %619
        %vm621 = vcmp.lt.s32.totalorder %v586, 15
        %v622 = vsel %vm621, %v618, %v620
        %v623 = vsel %vm621, %v620, %v618
        %v624 = vlaneseq
        %v625 = vshrl.u32 %v624, 7
        %v626 = vsub.s32 2, %v625
        %v627 = vrot.slane %v576, %v626
        %v628 = vlaneseq
        %v629 = vshrl.u32 %v628, 7
        %v630 = vsub.s32 2, %v629
        %v631 = vrot.slane %v577, %v630
        %v632 = vmul.f32 %v623, %v627
        %v633 = vmul.f32 %v622, %v631
        %634 = vrot.lane.b32.xlu0 %v574, 1
        %v635 = vpop.permute.xlu0 %634
        %636 = vrot.lane.b32.xlu0 %v575, 1
        %v637 = vpop.permute.xlu0 %636
        %vm638 = vcmp.lt.s32.totalorder %v586, 1
        %v639 = vsel %vm638, %v635, %v637
        %v640 = vsel %vm638, %v637, %v635
        %v641 = vlaneseq
        %v642 = vshrl.u32 %v641, 7
        %v643 = vsub.s32 3, %v642
        %v644 = vrot.slane %v576, %v643
        %v645 = vlaneseq
        %v646 = vshrl.u32 %v645, 7
        %v647 = vsub.s32 3, %v646
        %v648 = vrot.slane %v577, %v647
        %v649 = vmul.f32 %v640, %v644
        %v650 = vmul.f32 %v639, %v648
        %v651 = vlaneseq
        %v652 = vshrl.u32 %v651, 7
        %v653 = vsub.s32 4, %v652
        %v654 = vrot.slane %v576, %v653
        %v655 = vlaneseq
        %v656 = vshrl.u32 %v655, 7
        %v657 = vsub.s32 4, %v656
        %v658 = vrot.slane %v577, %v657
        %v659 = vmul.f32 %v574, %v654
        %v660 = vmul.f32 %v575, %v658
        %661 = vrot.lane.b32.xlu0 %v574, 127
        %v662 = vpop.permute.xlu0 %661
        %663 = vrot.lane.b32.xlu0 %v575, 127
        %v664 = vpop.permute.xlu0 %663
        %vm665 = vcmp.lt.s32.totalorder %v586, 127
        %v666 = vsel %vm665, %v662, %v664
        %v667 = vsel %vm665, %v664, %v662
        %v668 = vlaneseq
        %v669 = vshrl.u32 %v668, 7
        %v670 = vsub.s32 5, %v669
        %v671 = vrot.slane %v576, %v670
        %v672 = vlaneseq
        %v673 = vshrl.u32 %v672, 7
        %v674 = vsub.s32 5, %v673
        %v675 = vrot.slane %v577, %v674
        %v676 = vmul.f32 %v666, %v671
        %v677 = vmul.f32 %v667, %v675
        %678 = vrot.lane.b32.xlu0 %v574, 113
        %v679 = vpop.permute.xlu0 %678
        %680 = vrot.lane.b32.xlu0 %v575, 113
        %v681 = vpop.permute.xlu0 %680
        %vm682 = vcmp.lt.s32.totalorder %v586, 113
        %v683 = vsel %vm682, %v679, %v681
        %v684 = vsel %vm682, %v681, %v679
        %v685 = vlaneseq
        %v686 = vshrl.u32 %v685, 7
        %v687 = vsub.s32 6, %v686
        %v688 = vrot.slane %v576, %v687
        %v689 = vlaneseq
        %v690 = vshrl.u32 %v689, 7
        %v691 = vsub.s32 6, %v690
        %v692 = vrot.slane %v577, %v691
        %v693 = vmul.f32 %v683, %v688
        %v694 = vmul.f32 %v684, %v692
        %695 = vrot.lane.b32.xlu0 %v574, 112
        %v696 = vpop.permute.xlu0 %695
        %697 = vrot.lane.b32.xlu0 %v575, 112
        %v698 = vpop.permute.xlu0 %697
        %vm699 = vcmp.lt.s32.totalorder %v586, 112
        %v700 = vsel %vm699, %v696, %v698
        %v701 = vsel %vm699, %v698, %v696
        %v702 = vlaneseq
        %v703 = vshrl.u32 %v702, 7
        %v704 = vsub.s32 7, %v703
        %v705 = vrot.slane %v576, %v704
        %v706 = vlaneseq
        %v707 = vshrl.u32 %v706, 7
        %v708 = vsub.s32 7, %v707
        %v709 = vrot.slane %v577, %v708
        %v710 = vmul.f32 %v700, %v705
        %v711 = vmul.f32 %v701, %v709
        %712 = vrot.lane.b32.xlu0 %v574, 111
        %v713 = vpop.permute.xlu0 %712
        %714 = vrot.lane.b32.xlu0 %v575, 111
        %v715 = vpop.permute.xlu0 %714
        %vm716 = vcmp.lt.s32.totalorder %v586, 111
        %v717 = vsel %vm716, %v713, %v715
        %v718 = vsel %vm716, %v715, %v713
        %v719 = vlaneseq
        %v720 = vshrl.u32 %v719, 7
        %v721 = vsub.s32 0, %v720
        %v722 = vrot.slane %v578, %v721
        %v723 = vlaneseq
        %v724 = vshrl.u32 %v723, 7
        %v725 = vsub.s32 0, %v724
        %v726 = vrot.slane %v579, %v725
        %v727 = vmul.f32 %v717, %v722
        %v728 = vmul.f32 %v718, %v726
        %v729 = vpack.c.bf16 %v615, %v598
        %v730 = vpack.c.bf16 %v616, %v599
        %v731 = vpack.c.bf16 %v649, %v632
        %v732 = vpack.c.bf16 %v650, %v633
        %v733 = vpack.c.bf16 %v676, %v659
        %v734 = vpack.c.bf16 %v677, %v660
        %v735 = vpack.c.bf16 %v710, %v693
        %v736 = vpack.c.bf16 %v711, %v694
        %v737 = vpack.c.bf16 %v727, %v727
        %v738 = vpack.c.bf16 %v728, %v728
        %v739 = vld [vmem:[%s5] sm:$0xff]
        %741 = vset.pattern.permute.xlu0 0
        %742 = vperm.xlu0 %741, %v739
        %v743 = vpop.permute.xlu0 %742
        %vm745 = vcmask 588800
        %v747 = vsel %vm745, %v580, 0
        %v750 = vsel %vm347, %v737, 0
        %v753 = vsel %vm347, %v738, 0
        %755 = vmatprep.subr.bf16.mxu0 %v730
        %756 = vmatpush1.bf16.msra.mxu0 %v729
        %757 = vmatprep.subr.bf16.mxu0 %v732
        %758 = vmatpush1.bf16.msra.mxu0 %v731
        %759 = vmatprep.subr.bf16.mxu0 %v734
        %760 = vmatpush1.bf16.msra.mxu0 %v733
        %761 = vmatprep.subr.bf16.mxu0 %v736
        %762 = vmatpush1.bf16.msra.mxu0 %v735
        %763 = vmatprep.subr.bf16.mxu0 %v753
        %764 = vmatpush1.bf16.msra.mxu0 %v750
        %765 = vmatprep.subr.bf16.mxu0 0
        %766 = vmatpush1.bf16.msra.mxu0 0
        %767 = vmatprep.subr.bf16.mxu0 0
        %768 = vmatpush1.bf16.msra.mxu0 0
        %769 = vmatprep.subr.bf16.mxu0 0
        %770 = vmatpush1.bf16.msra.mxu0 0
        %771 = vmatprep.subr.bf16.mxu0 0
        %772 = vmatpush1.bf16.msra.mxu0 0
        %773 = vmatprep.subr.bf16.mxu0 0
        %774 = vmatpush1.bf16.msra.mxu0 0
        %775 = vmatprep.subr.bf16.mxu0 0
        %776 = vmatpush1.bf16.msra.mxu0 0
        %777 = vmatprep.subr.bf16.mxu0 0
        %778 = vmatpush1.bf16.msra.mxu0 0
        %779 = vmatprep.subr.bf16.mxu0 0
        %780 = vmatpush1.bf16.msra.mxu0 0
        %781 = vmatprep.subr.bf16.mxu0 0
        %782 = vmatpush1.bf16.msra.mxu0 0
        %783 = vmatprep.subr.bf16.mxu0 0
        %784 = vmatpush1.bf16.msra.mxu0 0
        %785 = vmatprep.subr.bf16.mxu0 0
        %786 = vmatpush1.bf16.msra.mxu0 0
        %787 = vmatprep.mubr.bf16.mxu0 0
        %788 = vmatmul.mubr.bf16.gmra.mrb[0].mxu0 %v747
        %v789 = vpop.f32.mrb[0].mxu0
        %v790 = vadd.f32 %v743, %v789
        %v791 = vpop.f32.mrb[0].mxu0
        %v792 = vadd.f32 %v743, %v791
        %v793 = vpop.f32.mrb[0].mxu0
        %v794 = vpop.f32.mrb[0].mxu0
        %795 = vdwg.mxu0
        %v796 = vmax.f32 %v790, 0.0
        %v797 = vmax.f32 %v792, 0.0
        %v798 = vld [vmem:[%s6] sm:$0xf]
        %799 = vrot.lane.b32.xlu0 %v796, 17
        %v800 = vpop.permute.xlu0 %799
        %801 = vrot.lane.b32.xlu0 %v797, 17
        %v802 = vpop.permute.xlu0 %801
        %v803 = vsel %vm587, %v800, %v802
        %v804 = vsel %vm587, %v802, %v800
        %v805 = vmul.f32 %v804, %v593
        %v806 = vmul.f32 %v803, %v597
        %807 = vrot.lane.b32.xlu0 %v796, 16
        %v808 = vpop.permute.xlu0 %807
        %809 = vrot.lane.b32.xlu0 %v797, 16
        %v810 = vpop.permute.xlu0 %809
        %v811 = vsel %vm604, %v808, %v810
        %v812 = vsel %vm604, %v810, %v808
        %v813 = vmul.f32 %v812, %v610
        %v814 = vmul.f32 %v811, %v614
        %815 = vrot.lane.b32.xlu0 %v796, 15
        %v816 = vpop.permute.xlu0 %815
        %817 = vrot.lane.b32.xlu0 %v797, 15
        %v818 = vpop.permute.xlu0 %817
        %v819 = vsel %vm621, %v816, %v818
        %v820 = vsel %vm621, %v818, %v816
        %v821 = vmul.f32 %v820, %v627
        %v822 = vmul.f32 %v819, %v631
        %823 = vrot.lane.b32.xlu0 %v796, 1
        %v824 = vpop.permute.xlu0 %823
        %825 = vrot.lane.b32.xlu0 %v797, 1
        %v826 = vpop.permute.xlu0 %825
        %v827 = vsel %vm638, %v824, %v826
        %v828 = vsel %vm638, %v826, %v824
        %v829 = vmul.f32 %v828, %v644
        %v830 = vmul.f32 %v827, %v648
        %v831 = vmul.f32 %v796, %v654
        %v832 = vmul.f32 %v797, %v658
        %833 = vrot.lane.b32.xlu0 %v796, 127
        %v834 = vpop.permute.xlu0 %833
        %835 = vrot.lane.b32.xlu0 %v797, 127
        %v836 = vpop.permute.xlu0 %835
        %v837 = vsel %vm665, %v834, %v836
        %v838 = vsel %vm665, %v836, %v834
        %v839 = vmul.f32 %v837, %v671
        %v840 = vmul.f32 %v838, %v675
        %841 = vrot.lane.b32.xlu0 %v796, 113
        %v842 = vpop.permute.xlu0 %841
        %843 = vrot.lane.b32.xlu0 %v797, 113
        %v844 = vpop.permute.xlu0 %843
        %v845 = vsel %vm682, %v842, %v844
        %v846 = vsel %vm682, %v844, %v842
        %v847 = vmul.f32 %v845, %v688
        %v848 = vmul.f32 %v846, %v692
        %849 = vrot.lane.b32.xlu0 %v796, 112
        %v850 = vpop.permute.xlu0 %849
        %851 = vrot.lane.b32.xlu0 %v797, 112
        %v852 = vpop.permute.xlu0 %851
        %v853 = vsel %vm699, %v850, %v852
        %v854 = vsel %vm699, %v852, %v850
        %v855 = vmul.f32 %v853, %v705
        %v856 = vmul.f32 %v854, %v709
        %857 = vrot.lane.b32.xlu0 %v796, 111
        %v858 = vpop.permute.xlu0 %857
        %859 = vrot.lane.b32.xlu0 %v797, 111
        %v860 = vpop.permute.xlu0 %859
        %v861 = vsel %vm716, %v858, %v860
        %v862 = vsel %vm716, %v860, %v858
        %v863 = vmul.f32 %v861, %v722
        %v864 = vmul.f32 %v862, %v726
        %v865 = vpack.c.bf16 %v813, %v805
        %v866 = vpack.c.bf16 %v814, %v806
        %v867 = vpack.c.bf16 %v829, %v821
        %v868 = vpack.c.bf16 %v830, %v822
        %v869 = vpack.c.bf16 %v839, %v831
        %v870 = vpack.c.bf16 %v840, %v832
        %v871 = vpack.c.bf16 %v855, %v847
        %v872 = vpack.c.bf16 %v856, %v848
        %v873 = vpack.c.bf16 %v863, %v863
        %v874 = vpack.c.bf16 %v864, %v864
        %v875 = vld [vmem:[%s7] sm:$0xff]
        %877 = vset.pattern.permute.xlu0 0
        %878 = vperm.xlu0 %877, %v875
        %v879 = vpop.permute.xlu0 %878
        %v882 = vsel %vm745, %v798, 0
        %v885 = vsel %vm347, %v873, 0
        %v888 = vsel %vm347, %v874, 0
        %890 = vmatprep.subr.bf16.mxu0 %v866
        %891 = vmatpush1.bf16.msra.mxu0 %v865
        %892 = vmatprep.subr.bf16.mxu0 %v868
        %893 = vmatpush1.bf16.msra.mxu0 %v867
        %894 = vmatprep.subr.bf16.mxu0 %v870
        %895 = vmatpush1.bf16.msra.mxu0 %v869
        %896 = vmatprep.subr.bf16.mxu0 %v872
        %897 = vmatpush1.bf16.msra.mxu0 %v871
        %898 = vmatprep.subr.bf16.mxu0 %v888
        %899 = vmatpush1.bf16.msra.mxu0 %v885
        %900 = vmatprep.subr.bf16.mxu0 0
        %901 = vmatpush1.bf16.msra.mxu0 0
        %902 = vmatprep.subr.bf16.mxu0 0
        %903 = vmatpush1.bf16.msra.mxu0 0
        %904 = vmatprep.subr.bf16.mxu0 0
        %905 = vmatpush1.bf16.msra.mxu0 0
        %906 = vmatprep.subr.bf16.mxu0 0
        %907 = vmatpush1.bf16.msra.mxu0 0
        %908 = vmatprep.subr.bf16.mxu0 0
        %909 = vmatpush1.bf16.msra.mxu0 0
        %910 = vmatprep.subr.bf16.mxu0 0
        %911 = vmatpush1.bf16.msra.mxu0 0
        %912 = vmatprep.subr.bf16.mxu0 0
        %913 = vmatpush1.bf16.msra.mxu0 0
        %914 = vmatprep.subr.bf16.mxu0 0
        %915 = vmatpush1.bf16.msra.mxu0 0
        %916 = vmatprep.subr.bf16.mxu0 0
        %917 = vmatpush1.bf16.msra.mxu0 0
        %918 = vmatprep.subr.bf16.mxu0 0
        %919 = vmatpush1.bf16.msra.mxu0 0
        %920 = vmatprep.subr.bf16.mxu0 0
        %921 = vmatpush1.bf16.msra.mxu0 0
        %922 = vmatprep.mubr.bf16.mxu0 0
        %923 = vmatmul.mubr.bf16.gmra.mrb[0].mxu0 %v882
        %v924 = vpop.f32.mrb[0].mxu0
        %v925 = vadd.f32 %v879, %v924
        %v926 = vpop.f32.mrb[0].mxu0
        %v927 = vadd.f32 %v879, %v926
        %v928 = vpop.f32.mrb[0].mxu0
        %v929 = vpop.f32.mrb[0].mxu0
        %930 = vdwg.mxu0
        %v931 = vmax.f32 %v925, 0.0
        %v932 = vmax.f32 %v927, 0.0
        %933 = vst [vmem:[%s313] sm:$0xff] %v931
        %934 = vst [vmem:[%s313 + $0x8] sm:$0xff] %v932
        %s935 = sand.u32 %s208, 1
        %s936 = scalar_lea.sflag [#allocation3], %s935
        %s937 = sand.u32 %s208, 1
        %s938 = smul.addr %s937, 16
        %s939 = scalar_lea.vmem [#allocation2], %s938
        // Predicated region
        $region53: #{tpu_custom_call.1} parent=51 // pred_check
          %p940 = pneg %p218
        $region54: #{tpu_custom_call.1} parent=51 // pred_check_branch
          %942 = sbr.rel (%p940) target = $region56
        $region55: #{tpu_custom_call.1} parent=51 // pred_region
          %s944 = ssub.s32 256, 256
          %945 = vsyncadd %s936, %s944
          %s946 = smul.addr %s22, 2
          %s947 = smul.addr %s946, 128
          %s948 = scalar_lea.hbm %s8, %s947
          %s950 = sshll.u32 %s939, 4
          %s951 = int_to_ptr.vmem [resolvable:$true] %s950
          %953 = dma.vmem_to_hbm [thread:$0]  %s951, 256, %s948, %s936
        $region56: #{tpu_custom_call.1} parent=51 // pred_fallthru
          _
      $region52: #{tpu_custom_call.1} parent=5 // pred_fallthru
        _
      %p954 = scmp.le.s32.totalorder 2, %s17
      // Predicated region
      $region57: #{tpu_custom_call.1} parent=5 // pred_check
        %p955 = pneg %p954
      $region58: #{tpu_custom_call.1} parent=5 // pred_check_branch
        %957 = sbr.rel (%p955) target = $region60
      $region59: #{tpu_custom_call.1} parent=5 // pred_region
        %s958 = ssub.s32 %s17, 2
        // Predicated region
        $region61: #{tpu_custom_call.1} parent=59 // pred_check
          %p959 = pneg %p224
        $region62: #{tpu_custom_call.1} parent=59 // pred_check_branch
          %961 = sbr.rel (%p959) target = $region64
        $region63: #{tpu_custom_call.1} parent=59 // pred_region
          %s962 = sand.u32 %s209, 1
          %s963 = scalar_lea.sflag [#allocation3], %s962
          %s964 = sand.u32 %s209, 1
          %s965 = smul.addr %s964, 16
          %s966 = scalar_lea.vmem [#allocation2], %s965
          %967 = dma.done %s963, 256
        $region64: #{tpu_custom_call.1} parent=59 // pred_fallthru
          _
      $region60: #{tpu_custom_call.1} parent=5 // pred_fallthru
        _
    $region6: #{tpu_custom_call.1} parent=1 // loop_footer
      %s21 = sadd.s32 1, %s17
    $region7: #{tpu_custom_call.1} parent=1 // loop_footer_branch
      %16 = sbr.rel target = $region3
    $region8: #{tpu_custom_call.1} parent=1 // loop_exit
      _
    %968 = vsyncpa [#allocation3], 1
    %s969 = scalar_lea.sflag [#allocation3], 1
    %970 = vsyncpa %s969, 1

</llo_original>
